<compile_context>
chip_gen: v6e
topology: v6e:2x2x1
jax: 0.10.0
libtpu: 0.0.40
codegen_flags: <defaults>
</compile_context>

<pallas_src>
import jax
import jax.numpy as jnp
from jax.experimental import pallas as pl
from jax.experimental.pallas import tpu as pltpu

PAD_WIDTH = 128  # lane-dense padded width for hidden / output features


def generator_kernel(x_ref, w1_ref, b1_ref, w23_ref, b23_ref, o_ref):
    # x: (TB, 20) in compute dtype; w1: (20, 128); w23: (128, 128);
    # biases are f32 (1, 128) rows; epilogue (bias/ReLU/sigmoid) is f32.
    x = x_ref[...]

    # Linear(20,50) [padded to 128 lanes] + bias + ReLU, f32 accumulation.
    h1 = jnp.dot(x, w1_ref[...], preferred_element_type=jnp.float32)
    h1 = jnp.maximum(h1 + b1_ref[...], 0.0)               # (TB, 128) f32

    # Folded Linear(50,50) @ Linear(50,n_attr)  [padded to 128x128].
    h1 = h1.astype(w23_ref.dtype)                          # MXU streaming dtype
    h3 = jnp.dot(h1, w23_ref[...], preferred_element_type=jnp.float32)
    h3 = h3 + b23_ref[...]                                 # (TB, 128) f32

    # Sigmoid epilogue on EUP; lane-dense (128-wide) unmasked store.
    o_ref[...] = jax.nn.sigmoid(h3).astype(o_ref.dtype)


def _round_up(a, m):
    return pl.cdiv(a, m) * m


def generator_forward(x, params, *, batch_tile=None,
                      compute_dtype=jnp.float32):
    """x: (B, 20) float32.  params: dict of w1,b1,w2,b2,w3,b3 (f32)."""
    B, D_in = x.shape
    assert D_in == 20
    w1, b1 = params["w1"], params["b1"]
    w2, b2 = params["w2"], params["b2"]
    w3, b3 = params["w3"], params["b3"]
    n_attr = w3.shape[1]
    assert n_attr <= PAD_WIDTH, "pad scheme assumes n_attr <= 128"

    # ---- offline algebra: fold the two activation-free Linears (f32) ----
    w23 = w2 @ w3                       # (50, n_attr)
    b23 = b2 @ w3 + b3                  # (1, n_attr)

    # ---- zero-pad feature dims to 128 (lane-dense intermediates/output) ----
    w1p = jnp.zeros((D_in, PAD_WIDTH), jnp.float32).at[:, :50].set(w1)
    b1p = jnp.zeros((1, PAD_WIDTH), jnp.float32).at[:, :50].set(b1)
    w23p = jnp.zeros((PAD_WIDTH, PAD_WIDTH), jnp.float32).at[:50, :n_attr].set(w23)
    b23p = jnp.zeros((1, PAD_WIDTH), jnp.float32).at[:, :n_attr].set(b23)

    # ---- streaming dtype for HBM-resident matmul operands ----
    xd = x.astype(compute_dtype)
    w1p = w1p.astype(compute_dtype)
    w23p = w23p.astype(compute_dtype)
    # biases stay f32: epilogue (bias add / ReLU / sigmoid) is f32 everywhere.

    # ---- batch tiling: big tiles (<=1024 rows), whole batch if small ----
    if batch_tile is None:
        batch_tile = min(1024, _round_up(B, 8))
    batch_tile = _round_up(batch_tile, 8)
    Bp = _round_up(B, batch_tile)
    if Bp != B:
        xd = jnp.pad(xd, ((0, Bp - B), (0, 0)))

    grid = (Bp // batch_tile,)

    def full(shape):
        # full-array block, same tile for every grid step (weights / biases
        # stay resident in VMEM across the whole grid)
        return pl.BlockSpec(shape, lambda i: (0, 0))

    out = pl.pallas_call(
        generator_kernel,
        out_shape=jax.ShapeDtypeStruct((Bp, PAD_WIDTH), jnp.float32),
        grid_spec=pltpu.PrefetchScalarGridSpec(
            num_scalar_prefetch=0,
            grid=grid,
            in_specs=[
                pl.BlockSpec((batch_tile, D_in), lambda i: (i, 0)),  # x tile
                full(w1p.shape), full(b1p.shape),
                full(w23p.shape), full(b23p.shape),
            ],
            out_specs=pl.BlockSpec((batch_tile, PAD_WIDTH), lambda i: (i, 0)),
        ),
        compiler_params=pltpu.CompilerParams(
            # batch axis is embarrassingly parallel -> shards across v7x's 2 TCs
            dimension_semantics=("parallel",)),
    )(xd, w1p, b1p, w23p, b23p)

    return out[:B, :n_attr]


def init_params(key, n_attr):
    """Deterministic init mimicking PyTorch Linear default (uniform +/-1/sqrt(fan_in))."""
    def linear(k, fan_in, fan_out):
        kw, kb = jax.random.split(k)
        bound = 1.0 / jnp.sqrt(fan_in)
        w = jax.random.uniform(kw, (fan_in, fan_out), jnp.float32, -bound, bound)
        b = jax.random.uniform(kb, (1, fan_out), jnp.float32, -bound, bound)
        return w, b

    k1, k2, k3 = jax.random.split(key, 3)
    w1, b1 = linear(k1, 20, 50)
    w2, b2 = linear(k2, 50, 50)
    w3, b3 = linear(k3, 50, n_attr)
    return dict(w1=w1, b1=b1, w2=w2, b2=b2, w3=w3, b3=b3)


def generator_reference(x, p):
    """Pure-JAX reference with the original (unfolded, unpadded, f32) math."""
    h1 = jnp.maximum(x @ p["w1"] + p["b1"], 0.0)
    h2 = h1 @ p["w2"] + p["b2"]
    h3 = h2 @ p["w3"] + p["b3"]
    return jax.nn.sigmoid(h3)


if __name__ == "__main__":
    key = jax.random.PRNGKey(0)
    k_x, k_p = jax.random.split(key)

    n_attr = 10
    B = 16                                      # small demo batch
    x = jax.random.normal(k_x, (B, 20), jnp.float32)
    params = init_params(k_p, n_attr)

    ref = generator_reference(x, params)

    # f32 path: must match the original module semantics tightly.
    out_f32 = jax.block_until_ready(
        generator_forward(x, params, compute_dtype=jnp.float32))
    assert out_f32.shape == (B, n_attr), out_f32.shape
    assert jnp.allclose(out_f32, ref, atol=1e-5, rtol=1e-5), "f32 mismatch"

    # bf16-streaming path (v6e/v7x bandwidth optimization): loose tolerance.
    out_bf16 = jax.block_until_ready(
        generator_forward(x, params, compute_dtype=jnp.bfloat16))
    assert out_bf16.shape == (B, n_attr), out_bf16.shape
    assert jnp.allclose(out_bf16, ref, atol=5e-2), "bf16 mismatch"

    print("KERNEL_OK")
</pallas_src>

<mosaic_0001>
module attributes {stable_mosaic.version = 11 : i64} {
  func.func @generator_kernel(%arg0: i32, %arg1: memref<16x20xf32, #tpu.memory_space<vmem>>, %arg2: memref<20x128xf32, #tpu.memory_space<vmem>>, %arg3: memref<1x128xf32, #tpu.memory_space<vmem>>, %arg4: memref<128x128xf32, #tpu.memory_space<vmem>>, %arg5: memref<1x128xf32, #tpu.memory_space<vmem>>, %arg6: memref<16x128xf32, #tpu.memory_space<vmem>>) attributes {dimension_semantics = [#tpu.dimension_semantics<parallel>], iteration_bounds = array<i64: 1>, scalar_prefetch = 0 : i64, scratch_operands = 0 : i64, tpu.core_type = #tpu.core_type<tc>, window_params = [{transform_indices = @transform_0, window_bounds = array<i64: 16, 20>}, {pipeline_mode = #tpu.pipeline_mode<synchronous>, transform_indices = @transform_1, window_bounds = array<i64: 20, 128>}, {pipeline_mode = #tpu.pipeline_mode<synchronous>, transform_indices = @transform_2, window_bounds = array<i64: 1, 128>}, {pipeline_mode = #tpu.pipeline_mode<synchronous>, transform_indices = @transform_3, window_bounds = array<i64: 128, 128>}, {pipeline_mode = #tpu.pipeline_mode<synchronous>, transform_indices = @transform_4, window_bounds = array<i64: 1, 128>}, {transform_indices = @transform_5, window_bounds = array<i64: 16, 128>}]} {
    %c0 = arith.constant 0 : index
    %c0_0 = arith.constant 0 : index
    %0 = vector.load %arg1[%c0, %c0_0] : memref<16x20xf32, #tpu.memory_space<vmem>>, vector<16x20xf32>
    %c0_1 = arith.constant 0 : index
    %c0_2 = arith.constant 0 : index
    %1 = vector.load %arg2[%c0_1, %c0_2] : memref<20x128xf32, #tpu.memory_space<vmem>>, vector<20x128xf32>
    %cst = arith.constant dense<0.000000e+00> : vector<16x128xf32>
    %2 = tpu.matmul %0, %1, %cst {dimension_numbers = #tpu.dot_dimension_numbers<[1], [0], [0], [1], [0, 0, 1, 1], [], []>} : vector<16x20xf32>, vector<20x128xf32>, vector<16x128xf32> -> vector<16x128xf32>
    %c0_3 = arith.constant 0 : index
    %c0_4 = arith.constant 0 : index
    %3 = vector.load %arg3[%c0_3, %c0_4] : memref<1x128xf32, #tpu.memory_space<vmem>>, vector<1x128xf32>
    %4 = vector.broadcast %3 : vector<1x128xf32> to vector<16x128xf32>
    %5 = arith.addf %2, %4 : vector<16x128xf32>
    %cst_5 = arith.constant 0.000000e+00 : f32
    %6 = vector.broadcast %cst_5 : f32 to vector<16x128xf32>
    %7 = arith.maximumf %5, %6 : vector<16x128xf32>
    %c0_6 = arith.constant 0 : index
    %c0_7 = arith.constant 0 : index
    %8 = vector.load %arg4[%c0_6, %c0_7] : memref<128x128xf32, #tpu.memory_space<vmem>>, vector<128x128xf32>
    %cst_8 = arith.constant dense<0.000000e+00> : vector<16x128xf32>
    %9 = tpu.matmul %7, %8, %cst_8 {dimension_numbers = #tpu.dot_dimension_numbers<[1], [0], [0], [1], [0, 0, 1, 1], [], []>} : vector<16x128xf32>, vector<128x128xf32>, vector<16x128xf32> -> vector<16x128xf32>
    %c0_9 = arith.constant 0 : index
    %c0_10 = arith.constant 0 : index
    %10 = vector.load %arg5[%c0_9, %c0_10] : memref<1x128xf32, #tpu.memory_space<vmem>>, vector<1x128xf32>
    %11 = vector.broadcast %10 : vector<1x128xf32> to vector<16x128xf32>
    %12 = arith.addf %9, %11 : vector<16x128xf32>
    %13 = arith.negf %12 : vector<16x128xf32>
    %14 = math.exp %13 : vector<16x128xf32>
    %cst_11 = arith.constant 1.000000e+00 : f32
    %15 = vector.broadcast %cst_11 : f32 to vector<16x128xf32>
    %16 = arith.addf %15, %14 : vector<16x128xf32>
    %17 = arith.divf %15, %16 : vector<16x128xf32>
    %c0_12 = arith.constant 0 : index
    %c0_13 = arith.constant 0 : index
    %18 = vector.load %arg6[%c0_12, %c0_13] : memref<16x128xf32, #tpu.memory_space<vmem>>, vector<16x128xf32>
    tpu.vector_store %arg6[%c0_12, %c0_13], %17 {strides = array<i32>} : memref<16x128xf32, #tpu.memory_space<vmem>>, vector<16x128xf32>,
    return
  }
  func.func @transform_0(%arg0: i32) -> (i32, i32) {
    %c0_i32 = arith.constant 0 : i32
    %c0_i32_0 = arith.constant 0 : i32
    return %arg0, %c0_i32 : i32, i32
  }
  func.func @transform_1(%arg0: i32) -> (i32, i32) {
    %c0_i32 = arith.constant 0 : i32
    %c0_i32_0 = arith.constant 0 : i32
    %c0_i32_1 = arith.constant 0 : i32
    return %c0_i32, %c0_i32_0 : i32, i32
  }
  func.func @transform_2(%arg0: i32) -> (i32, i32) {
    %c0_i32 = arith.constant 0 : i32
    %c0_i32_0 = arith.constant 0 : i32
    %c0_i32_1 = arith.constant 0 : i32
    return %c0_i32, %c0_i32_0 : i32, i32
  }
  func.func @transform_3(%arg0: i32) -> (i32, i32) {
    %c0_i32 = arith.constant 0 : i32
    %c0_i32_0 = arith.constant 0 : i32
    %c0_i32_1 = arith.constant 0 : i32
    return %c0_i32, %c0_i32_0 : i32, i32
  }
  func.func @transform_4(%arg0: i32) -> (i32, i32) {
    %c0_i32 = arith.constant 0 : i32
    %c0_i32_0 = arith.constant 0 : i32
    %c0_i32_1 = arith.constant 0 : i32
    return %c0_i32, %c0_i32_0 : i32, i32
  }
  func.func @transform_5(%arg0: i32) -> (i32, i32) {
    %c0_i32 = arith.constant 0 : i32
    %c0_i32_0 = arith.constant 0 : i32
    return %arg0, %c0_i32 : i32, i32
  }
}

</mosaic_0001>

<llo_original>
// kernel: tpu_custom_call.1
$region0: #{tpu_custom_call.1}
  #allocation0 [shape = 'u32[]', space=smem, size = 0x4, offset = 0x4, fixed_abs, tag = 'smem constant byte address 0x4 - core index']
  #allocation1 [shape = 'u32[144,128]{1,0:T(1,128)}', space=vmem, size = 0x12000, scoped, tag = 'internal scratch']
  %s0 = inlined_call_operand.hbm [shape: f32[16,20], index: 0, kind: input, shape index: {}]
  %s1 = inlined_call_operand.hbm [shape: f32[20,128], index: 1, kind: input, shape index: {}]
  %s2 = inlined_call_operand.vmem [shape: f32[1,128], index: 2, kind: input, shape index: {}]
  %s3 = inlined_call_operand.hbm [shape: f32[128,128], index: 3, kind: input, shape index: {}]
  %s4 = inlined_call_operand.vmem [shape: f32[1,128], index: 4, kind: input, shape index: {}]
  %s5 = inlined_call_operand.hbm [shape: f32[16,128], index: 5, kind: output, shape index: {}]
  %s6 = sld [smem:[#allocation0]]
  $region42: #{tpu_custom_call.1} parent=0
    _
  %s8 = ssub.s32 1, %s6
  %s9 = scalar_select 0, %s8, %s6
  $region1: #{tpu_custom_call.1} parent=0
    #allocation2 [shape = 'u8[8192]{0}', space=vmem, size = 0x2000, scoped, tag = 'input window, operand 0, single buffered']
    #allocation3 [shape = 's32[1]{0}', space=sflag, size = 0x4, scoped, tag = 'scoped memory for tpu_custom_call.1']
    #allocation4 [shape = 's32[1]{0}', space=sflag, size = 0x4, scoped, tag = 'scoped memory for tpu_custom_call.1']
    #allocation5 [shape = 'u8[12288]{0}', space=vmem, size = 0x3000, scoped, tag = 'input window, operand 1, single buffered']
    #allocation6 [shape = 's32[1]{0}', space=sflag, size = 0x4, scoped, tag = 'scoped memory for tpu_custom_call.1']
    #allocation7 [shape = 'u8[65536]{0}', space=vmem, size = 0x10000, scoped, tag = 'input window, operand 3, single buffered']
    #allocation8 [shape = 'u8[8192]{0}', space=vmem, size = 0x2000, scoped, tag = 'output window, operand 0, single buffered']
    %10 = vsyncpa [#allocation3], 0
    %11 = vsyncpa [#allocation6], 0
    %12 = vsyncpa [#allocation4], 0
    // Predicated region
    $region2: #{tpu_custom_call.1} parent=1 // pred_check
      _
    $region3: #{tpu_custom_call.1} parent=1 // pred_check_branch
      %14 = sbr.rel (0) target = $region5
    $region4: #{tpu_custom_call.1} parent=1 // pred_region
      %s16 = ssub.s32 256, 256
      %17 = vsyncadd [#allocation3], %s16
      %s18 = sshll.u32 [#allocation2], 4
      %s19 = int_to_ptr.vmem [resolvable:$true] %s18
      %24 = dma.hbm_to_vmem [thread:$0]  %s0, 256, %s19, [#allocation3], 128, 128, 8
    $region5: #{tpu_custom_call.1} parent=1 // pred_fallthru
      _
    // Predicated region
    $region6: #{tpu_custom_call.1} parent=1 // pred_check
      _
    $region7: #{tpu_custom_call.1} parent=1 // pred_check_branch
      %26 = sbr.rel (0) target = $region9
    $region8: #{tpu_custom_call.1} parent=1 // pred_region
      %s28 = ssub.s32 384, 384
      %29 = vsyncadd [#allocation6], %s28
      %s30 = sshll.u32 [#allocation5], 4
      %s31 = int_to_ptr.vmem [resolvable:$true] %s30
      %36 = dma.hbm_to_vmem [thread:$0]  %s1, 384, %s31, [#allocation6], 128, 128, 8
    $region9: #{tpu_custom_call.1} parent=1 // pred_fallthru
      _
    // Predicated region
    $region10: #{tpu_custom_call.1} parent=1 // pred_check
      _
    $region11: #{tpu_custom_call.1} parent=1 // pred_check_branch
      %38 = sbr.rel (0) target = $region13
    $region12: #{tpu_custom_call.1} parent=1 // pred_region
      _
    $region13: #{tpu_custom_call.1} parent=1 // pred_fallthru
      _
    // Predicated region
    $region14: #{tpu_custom_call.1} parent=1 // pred_check
      _
    $region15: #{tpu_custom_call.1} parent=1 // pred_check_branch
      %40 = sbr.rel (0) target = $region17
    $region16: #{tpu_custom_call.1} parent=1 // pred_region
      %s42 = ssub.s32 2048, 2048
      %43 = vsyncadd [#allocation6], %s42
      %s44 = sshll.u32 [#allocation7], 4
      %s45 = int_to_ptr.vmem [resolvable:$true] %s44
      %50 = dma.hbm_to_vmem [thread:$0]  %s3, 2048, %s45, [#allocation6], 128, 128, 8
    $region17: #{tpu_custom_call.1} parent=1 // pred_fallthru
      _
    // Predicated region
    $region18: #{tpu_custom_call.1} parent=1 // pred_check
      _
    $region19: #{tpu_custom_call.1} parent=1 // pred_check_branch
      %52 = sbr.rel (0) target = $region21
    $region20: #{tpu_custom_call.1} parent=1 // pred_region
      _
    $region21: #{tpu_custom_call.1} parent=1 // pred_fallthru
      _
    // Predicated region
    $region22: #{tpu_custom_call.1} parent=1 // pred_check
      _
    $region23: #{tpu_custom_call.1} parent=1 // pred_check_branch
      %54 = sbr.rel (0) target = $region25
    $region24: #{tpu_custom_call.1} parent=1 // pred_region
      %55 = dma.done [#allocation3], 256
    $region25: #{tpu_custom_call.1} parent=1 // pred_fallthru
      _
    // Predicated region
    $region26: #{tpu_custom_call.1} parent=1 // pred_check
      _
    $region27: #{tpu_custom_call.1} parent=1 // pred_check_branch
      %57 = sbr.rel (0) target = $region29
    $region28: #{tpu_custom_call.1} parent=1 // pred_region
      %58 = dma.done [#allocation6], 384
    $region29: #{tpu_custom_call.1} parent=1 // pred_fallthru
      _
    // Predicated region
    $region30: #{tpu_custom_call.1} parent=1 // pred_check
      _
    $region31: #{tpu_custom_call.1} parent=1 // pred_check_branch
      %60 = sbr.rel (0) target = $region33
    $region32: #{tpu_custom_call.1} parent=1 // pred_region
      %61 = dma.done [#allocation6], 2048
    $region33: #{tpu_custom_call.1} parent=1 // pred_fallthru
      _
    %v62 = vld [vmem:[#allocation2] sm:$0xff]
    %v63 = vld [vmem:[#allocation2 + $0x8] sm:$0xff]
    %v64 = vld [vmem:[#allocation5] sm:$0xff]
    %v65 = vld [vmem:[#allocation5 + $0x8] sm:$0xff]
    %v66 = vld [vmem:[#allocation5 + $0x10] sm:$0xf]
    %v67 = vld [vmem:[%s2] sm:$0x1]
    %v69 = vlaneseq
    %v70 = vshrl.u32 %v69, 7
    %v71 = vsub.s32 0, %v70
    %v72 = vrot.slane %v67, %v71
    %vm74 = vcmask 162816
    %v76 = vsel %vm74, %v62, 0
    %v79 = vsel %vm74, %v63, 0
    %vm81 = vcmask 1043456
    %v83 = vsel %vm81, %v66, 0
    %85 = vmatprep.subr.mxu0 0.0
    %86 = vmatpush1.msra.mxu0 0.0
    %87 = vmatprep.subr.mxu0 0.0
    %88 = vmatpush1.msra.mxu0 0.0
    %89 = vmatprep.subr.mxu0 0.0
    %90 = vmatpush1.msra.mxu0 0.0
    %91 = vmatprep.subr.mxu0 0.0
    %92 = vmatpush1.msra.mxu0 0.0
    %93 = vmatprep.subr.mxu0 0.0
    %94 = vmatpush1.msra.mxu0 0.0
    %95 = vmatprep.subr.mxu0 0.0
    %96 = vmatpush1.msra.mxu0 0.0
    %97 = vmatprep.subr.mxu0 0.0
    %98 = vmatpush1.msra.mxu0 0.0
    %99 = vmatprep.subr.mxu0 0.0
    %100 = vmatpush1.msra.mxu0 0.0
    %101 = vmatprep.subr.mxu0 0.0
    %102 = vmatpush1.msra.mxu0 0.0
    %103 = vmatprep.subr.mxu0 0.0
    %104 = vmatpush1.msra.mxu0 0.0
    %105 = vmatprep.subr.mxu0 0.0
    %106 = vmatpush1.msra.mxu0 0.0
    %107 = vmatprep.subr.mxu0 0.0
    %108 = vmatpush1.msra.mxu0 0.0
    %109 = vmatprep.subr.mxu0 0.0
    %110 = vmatpush1.msra.mxu0 0.0
    %111 = vmatprep.subr.mxu0 0.0
    %112 = vmatpush1.msra.mxu0 %v83
    %113 = vmatprep.subr.mxu0 0.0
    %114 = vmatpush1.msra.mxu0 %v65
    %115 = vmatprep.subr.mxu0 0.0
    %116 = vmatpush1.msra.mxu0 %v64
    %117 = vmatprep.subr.mxu0 0.0
    %118 = vmatpush2.msra.mxu0 0.0
    %119 = vmatprep.subr.mxu0 0.0
    %120 = vmatpush2.msra.mxu0 0.0
    %121 = vmatprep.subr.mxu0 0.0
    %122 = vmatpush2.msra.mxu0 0.0
    %123 = vmatprep.subr.mxu0 0.0
    %124 = vmatpush2.msra.mxu0 0.0
    %125 = vmatprep.subr.mxu0 0.0
    %126 = vmatpush2.msra.mxu0 0.0
    %127 = vmatprep.subr.mxu0 0.0
    %128 = vmatpush2.msra.mxu0 0.0
    %129 = vmatprep.subr.mxu0 0.0
    %130 = vmatpush2.msra.mxu0 0.0
    %131 = vmatprep.subr.mxu0 0.0
    %132 = vmatpush2.msra.mxu0 0.0
    %133 = vmatprep.subr.mxu0 0.0
    %134 = vmatpush2.msra.mxu0 0.0
    %135 = vmatprep.subr.mxu0 0.0
    %136 = vmatpush2.msra.mxu0 0.0
    %137 = vmatprep.subr.mxu0 0.0
    %138 = vmatpush2.msra.mxu0 0.0
    %139 = vmatprep.subr.mxu0 0.0
    %140 = vmatpush2.msra.mxu0 0.0
    %141 = vmatprep.subr.mxu0 0.0
    %142 = vmatpush2.msra.mxu0 0.0
    %143 = vmatprep.subr.mxu0 0.0
    %144 = vmatpush2.msra.mxu0 0.0
    %145 = vmatprep.subr.mxu0 0.0
    %146 = vmatpush2.msra.mxu0 0.0
    %147 = vmatprep.subr.mxu0 0.0
    %148 = vmatpush2.msra.mxu0 0.0
    %149 = vmatprep.mubr.f32.mxu0 0.0
    %150 = vmatmul.mubr.f32.gmra.mxu0 %v76
    %v151 = vpop.f32.mrf.mxu0
    %v152 = vadd.f32 %v72, %v151
    %v153 = vpop.f32.mrf.mxu0
    %154 = vmatprep.mubr.f32.mxu0 0.0
    %155 = vmatmul.mubr.f32.gmra.mxu0 %v79
    %v156 = vpop.f32.mrf.mxu0
    %v157 = vadd.f32 %v72, %v156
    %v158 = vpop.f32.mrf.mxu0
    %159 = vdwg.mxu0
    %v160 = vmax.f32 %v152, 0.0
    %v161 = vmax.f32 %v157, 0.0
    %v162 = vld [vmem:[#allocation7] sm:$0xff]
    %v163 = vld [vmem:[#allocation7 + $0x8] sm:$0xff]
    %v164 = vld [vmem:[#allocation7 + $0x10] sm:$0xff]
    %v165 = vld [vmem:[#allocation7 + $0x18] sm:$0xff]
    %v166 = vld [vmem:[#allocation7 + $0x20] sm:$0xff]
    %v167 = vld [vmem:[#allocation7 + $0x28] sm:$0xff]
    %v168 = vld [vmem:[#allocation7 + $0x30] sm:$0xff]
    %v169 = vld [vmem:[#allocation7 + $0x38] sm:$0xff]
    %v170 = vld [vmem:[#allocation7 + $0x40] sm:$0xff]
    %v171 = vld [vmem:[#allocation7 + $0x48] sm:$0xff]
    %v172 = vld [vmem:[#allocation7 + $0x50] sm:$0xff]
    %v173 = vld [vmem:[#allocation7 + $0x58] sm:$0xff]
    %v174 = vld [vmem:[#allocation7 + $0x60] sm:$0xff]
    %v175 = vld [vmem:[#allocation7 + $0x68] sm:$0xff]
    %v176 = vld [vmem:[#allocation7 + $0x70] sm:$0xff]
    %v177 = vld [vmem:[#allocation7 + $0x78] sm:$0xff]
    %v178 = vld [vmem:[%s4] sm:$0x1]
    %v180 = vlaneseq
    %v181 = vshrl.u32 %v180, 7
    %v182 = vsub.s32 0, %v181
    %v183 = vrot.slane %v178, %v182
    %185 = vmatprep.subr.mxu0 0.0
    %186 = vmatpush1.msra.mxu0 %v177
    %187 = vmatprep.subr.mxu0 0.0
    %188 = vmatpush1.msra.mxu0 %v176
    %189 = vmatprep.subr.mxu0 0.0
    %190 = vmatpush1.msra.mxu0 %v175
    %191 = vmatprep.subr.mxu0 0.0
    %192 = vmatpush1.msra.mxu0 %v174
    %193 = vmatprep.subr.mxu0 0.0
    %194 = vmatpush1.msra.mxu0 %v173
    %195 = vmatprep.subr.mxu0 0.0
    %196 = vmatpush1.msra.mxu0 %v172
    %197 = vmatprep.subr.mxu0 0.0
    %198 = vmatpush1.msra.mxu0 %v171
    %199 = vmatprep.subr.mxu0 0.0
    %200 = vmatpush1.msra.mxu0 %v170
    %201 = vmatprep.subr.mxu0 0.0
    %202 = vmatpush1.msra.mxu0 %v169
    %203 = vmatprep.subr.mxu0 0.0
    %204 = vmatpush1.msra.mxu0 %v168
    %205 = vmatprep.subr.mxu0 0.0
    %206 = vmatpush1.msra.mxu0 %v167
    %207 = vmatprep.subr.mxu0 0.0
    %208 = vmatpush1.msra.mxu0 %v166
    %209 = vmatprep.subr.mxu0 0.0
    %210 = vmatpush1.msra.mxu0 %v165
    %211 = vmatprep.subr.mxu0 0.0
    %212 = vmatpush1.msra.mxu0 %v164
    %213 = vmatprep.subr.mxu0 0.0
    %214 = vmatpush1.msra.mxu0 %v163
    %215 = vmatprep.subr.mxu0 0.0
    %216 = vmatpush1.msra.mxu0 %v162
    %217 = vmatprep.subr.mxu0 0.0
    %218 = vmatpush2.msra.mxu0 0.0
    %219 = vmatprep.subr.mxu0 0.0
    %220 = vmatpush2.msra.mxu0 0.0
    %221 = vmatprep.subr.mxu0 0.0
    %222 = vmatpush2.msra.mxu0 0.0
    %223 = vmatprep.subr.mxu0 0.0
    %224 = vmatpush2.msra.mxu0 0.0
    %225 = vmatprep.subr.mxu0 0.0
    %226 = vmatpush2.msra.mxu0 0.0
    %227 = vmatprep.subr.mxu0 0.0
    %228 = vmatpush2.msra.mxu0 0.0
    %229 = vmatprep.subr.mxu0 0.0
    %230 = vmatpush2.msra.mxu0 0.0
    %231 = vmatprep.subr.mxu0 0.0
    %232 = vmatpush2.msra.mxu0 0.0
    %233 = vmatprep.subr.mxu0 0.0
    %234 = vmatpush2.msra.mxu0 0.0
    %235 = vmatprep.subr.mxu0 0.0
    %236 = vmatpush2.msra.mxu0 0.0
    %237 = vmatprep.subr.mxu0 0.0
    %238 = vmatpush2.msra.mxu0 0.0
    %239 = vmatprep.subr.mxu0 0.0
    %240 = vmatpush2.msra.mxu0 0.0
    %241 = vmatprep.subr.mxu0 0.0
    %242 = vmatpush2.msra.mxu0 0.0
    %243 = vmatprep.subr.mxu0 0.0
    %244 = vmatpush2.msra.mxu0 0.0
    %245 = vmatprep.subr.mxu0 0.0
    %246 = vmatpush2.msra.mxu0 0.0
    %247 = vmatprep.subr.mxu0 0.0
    %248 = vmatpush2.msra.mxu0 0.0
    %249 = vmatprep.mubr.f32.mxu0 0.0
    %250 = vmatmul.mubr.f32.gmra.mxu0 %v160
    %v251 = vpop.f32.mrf.mxu0
    %v252 = vadd.f32 %v183, %v251
    %v253 = vpop.f32.mrf.mxu0
    %254 = vmatprep.mubr.f32.mxu0 0.0
    %255 = vmatmul.mubr.f32.gmra.mxu0 %v161
    %v256 = vpop.f32.mrf.mxu0
    %v257 = vadd.f32 %v183, %v256
    %v258 = vpop.f32.mrf.mxu0
    %259 = vdwg.mxu0
    %v260 = vxor.u32 %v252, 2147483648
    %v261 = vxor.u32 %v257, 2147483648
    %v262 = vmul.f32 %v260, 1.442695
    %v263 = vpow.pop %v262
    %v264 = vmul.f32 %v261, 1.442695
    %v265 = vpow.pop %v264
    %v266 = vadd.f32 %v263, 1.0
    %v267 = vadd.f32 %v265, 1.0
    %v268 = vrcp.pop %v266
    %v269 = vmul.f32 1.0, %v268
    %v270 = vrcp.pop %v267
    %v271 = vmul.f32 1.0, %v270
    %272 = vst [vmem:[#allocation8] sm:$0xff] %v269
    %273 = vst [vmem:[#allocation8 + $0x8] sm:$0xff] %v271
    // Predicated region
    $region34: #{tpu_custom_call.1} parent=1 // pred_check
      _
    $region35: #{tpu_custom_call.1} parent=1 // pred_check_branch
      %275 = sbr.rel (0) target = $region37
    $region36: #{tpu_custom_call.1} parent=1 // pred_region
      %s277 = ssub.s32 256, 256
      %278 = vsyncadd [#allocation4], %s277
      %s279 = sshll.u32 [#allocation8], 4
      %s280 = int_to_ptr.vmem [resolvable:$true] %s279
      %285 = dma.vmem_to_hbm [thread:$0]  %s280, 256, %s5, [#allocation4], 128, 128, 8
    $region37: #{tpu_custom_call.1} parent=1 // pred_fallthru
      _
    // Predicated region
    $region38: #{tpu_custom_call.1} parent=1 // pred_check
      _
    $region39: #{tpu_custom_call.1} parent=1 // pred_check_branch
      %287 = sbr.rel (0) target = $region41
    $region40: #{tpu_custom_call.1} parent=1 // pred_region
      %288 = dma.done [#allocation4], 256
    $region41: #{tpu_custom_call.1} parent=1 // pred_fallthru
      _
    %289 = vsyncpa [#allocation3], 1
    %290 = vsyncpa [#allocation6], 1
    %291 = vsyncpa [#allocation4], 1

</llo_original>
